<compile_context>
chip_gen: v6e
topology: v6e:2x2x1
jax: 0.10.0
libtpu: 0.0.40
codegen_flags: <defaults>
</compile_context>

<pallas_src>
import math

import jax
import jax.numpy as jnp
from jax import lax
from jax.experimental import pallas as pl
from jax.experimental.pallas import tpu as pltpu


# ----------------------------------------------------------------------------
# helpers
# ----------------------------------------------------------------------------
def _round_up(x: int, m: int) -> int:
    return ((x + m - 1) // m) * m


def _pick_tile(n: int, target: int, align: int = 8) -> int:
    """Largest divisor of n that is <= target and a multiple of `align`.

    Falls back to n (full extent), which is always a legal block dim.
    """
    if n <= target:
        return n
    for t in range(target, align - 1, -1):
        if n % t == 0 and t % align == 0:
            return t
    return n


# ----------------------------------------------------------------------------
# Stage 1: fused Q/K/V projections (lane-dense, row-tiled)
# ----------------------------------------------------------------------------
def _projection_kernel(q_ref, k_ref, v_ref,
                       wq_ref, bq_ref, wk_ref, bk_ref, wv_ref, bv_ref,
                       qo_ref, ko_ref, vo_ref):
    qo_ref[...] = (jnp.dot(q_ref[...], wq_ref[...],
                           preferred_element_type=jnp.float32)
                   + bq_ref[...]).astype(qo_ref.dtype)
    ko_ref[...] = (jnp.dot(k_ref[...], wk_ref[...],
                           preferred_element_type=jnp.float32)
                   + bk_ref[...]).astype(ko_ref.dtype)
    vo_ref[...] = (jnp.dot(v_ref[...], wv_ref[...],
                           preferred_element_type=jnp.float32)
                   + bv_ref[...]).astype(vo_ref.dtype)


# ----------------------------------------------------------------------------
# Stage 2: flash attention (online softmax over kv tiles)
# ----------------------------------------------------------------------------
def _flash_attention_kernel(q_ref, k_ref, v_ref, o_ref, m_ref, l_ref, acc_ref):
    ki = pl.program_id(2)

    @pl.when(ki == 0)
    def _():
        m_ref[...] = jnp.full(m_ref.shape, -jnp.inf, dtype=m_ref.dtype)
        l_ref[...] = jnp.zeros(l_ref.shape, dtype=l_ref.dtype)
        acc_ref[...] = jnp.zeros(acc_ref.shape, dtype=acc_ref.dtype)

    q = q_ref[0]          # (tq, Dq_p) -- scale already folded into wq/bq
    k = k_ref[0]          # (tk, Dk_p)
    v = v_ref[0]          # (tk, Dk_p)

    # NT contraction: contract the last dims of q and k -> no in-kernel
    # transpose of the key tile.
    s = lax.dot_general(q, k, (((1,), (1,)), ((), ())),
                        preferred_element_type=jnp.float32)      # (tq, tk)

    m_prev = m_ref[...]
    m_new = jnp.maximum(m_prev, jnp.max(s, axis=-1, keepdims=True))
    alpha = jnp.exp(m_prev - m_new)
    p = jnp.exp(s - m_new)
    l_ref[...] = alpha * l_ref[...] + jnp.sum(p, axis=-1, keepdims=True)
    acc_ref[...] = alpha * acc_ref[...] + jnp.dot(
        p.astype(v.dtype), v, preferred_element_type=jnp.float32)
    m_ref[...] = m_new

    @pl.when(ki == pl.num_programs(2) - 1)
    def _():
        inv_l = pl.reciprocal(l_ref[...], approx=True)
        o_ref[0] = (acc_ref[...] * inv_l).astype(o_ref.dtype)


# ----------------------------------------------------------------------------
# wrapper
# ----------------------------------------------------------------------------
def attention_head(q, k, v, params, *,
                   tq_target=256, tk_target=512, row_tile_target=512):
    """q, k, v: (B, S, dim_in).  params: nn.Linear-style weights/biases."""
    B, S, dim_in = q.shape
    wq, bq = params["wq"], params["bq"]       # (dim_q, dim_in), (dim_q,)
    wk, bk = params["wk"], params["bk"]
    wv, bv = params["wv"], params["bv"]
    dim_q, dim_k = wq.shape[0], wk.shape[0]
    assert dim_q == dim_k, "Q @ K^T requires dim_q == dim_k"

    f32 = jnp.float32
    din_p = _round_up(dim_in, 128)
    dq_p = _round_up(dim_q, 128)
    dk_p = _round_up(dim_k, 128)

    scale = 1.0 / math.sqrt(dim_q)            # folded into the Q projection

    def prep_w(w, b, d_out_p, mult=1.0):
        # nn.Linear weight (out, in) -> transposed + zero-padded (din_p, d_out_p)
        d_out = w.shape[0]
        wt = jnp.zeros((din_p, d_out_p), f32)
        wt = wt.at[:dim_in, :d_out].set((w.astype(f32) * mult).T)
        bb = jnp.zeros((1, d_out_p), f32)
        bb = bb.at[0, :d_out].set(b.astype(f32) * mult)
        return wt, bb

    wq_p, bq_p = prep_w(wq, bq, dq_p, scale)
    wk_p, bk_p = prep_w(wk, bk, dk_p)
    wv_p, bv_p = prep_w(wv, bv, dk_p)

    def pad_feat(x):
        return jnp.pad(x.astype(f32), ((0, 0), (0, 0), (0, din_p - dim_in)))

    rows = B * S
    q_rows = pad_feat(q).reshape(rows, din_p)
    k_rows = pad_feat(k).reshape(rows, din_p)
    v_rows = pad_feat(v).reshape(rows, din_p)

    # ---------------- stage 1: projections ----------------
    ts = _pick_tile(rows, row_tile_target)
    row_spec = pl.BlockSpec((ts, din_p), lambda i: (i, 0))
    w_spec = lambda dp: pl.BlockSpec((din_p, dp), lambda i: (0, 0))
    b_spec = lambda dp: pl.BlockSpec((1, dp), lambda i: (0, 0))
    out_row_spec = lambda dp: pl.BlockSpec((ts, dp), lambda i: (i, 0))

    qp, kp, vp = pl.pallas_call(
        _projection_kernel,
        out_shape=(jax.ShapeDtypeStruct((rows, dq_p), f32),
                   jax.ShapeDtypeStruct((rows, dk_p), f32),
                   jax.ShapeDtypeStruct((rows, dk_p), f32)),
        grid_spec=pltpu.PrefetchScalarGridSpec(
            num_scalar_prefetch=0,
            grid=(rows // ts,),
            in_specs=[row_spec, row_spec, row_spec,
                      w_spec(dq_p), b_spec(dq_p),
                      w_spec(dk_p), b_spec(dk_p),
                      w_spec(dk_p), b_spec(dk_p)],
            out_specs=[out_row_spec(dq_p), out_row_spec(dk_p),
                       out_row_spec(dk_p)],
        ),
        compiler_params=pltpu.CompilerParams(
            dimension_semantics=("parallel",),
            vmem_limit_bytes=32 * 1024 * 1024),
    )(q_rows, k_rows, v_rows, wq_p, bq_p, wk_p, bk_p, wv_p, bv_p)

    qp = qp.reshape(B, S, dq_p)
    kp = kp.reshape(B, S, dk_p)
    vp = vp.reshape(B, S, dk_p)

    # ---------------- stage 2: flash attention ----------------
    tq = _pick_tile(S, tq_target)
    tk = _pick_tile(S, tk_target)
    nq, nk = S // tq, S // tk

    out_p = pl.pallas_call(
        _flash_attention_kernel,
        out_shape=jax.ShapeDtypeStruct((B, S, dk_p), f32),
        grid_spec=pltpu.PrefetchScalarGridSpec(
            num_scalar_prefetch=0,
            grid=(B, nq, nk),
            in_specs=[
                pl.BlockSpec((1, tq, dq_p), lambda b, qi, ki: (b, qi, 0)),
                pl.BlockSpec((1, tk, dk_p), lambda b, qi, ki: (b, ki, 0)),
                pl.BlockSpec((1, tk, dk_p), lambda b, qi, ki: (b, ki, 0)),
            ],
            out_specs=pl.BlockSpec((1, tq, dk_p), lambda b, qi, ki: (b, qi, 0)),
            scratch_shapes=[pltpu.VMEM((tq, 1), f32),      # running max m
                            pltpu.VMEM((tq, 1), f32),      # running sum l
                            pltpu.VMEM((tq, dk_p), f32)],  # output accumulator
        ),
        compiler_params=pltpu.CompilerParams(
            dimension_semantics=("parallel", "parallel", "arbitrary"),
            vmem_limit_bytes=32 * 1024 * 1024),
    )(qp, kp, vp)

    return out_p[..., :dim_k]


# ----------------------------------------------------------------------------
# pure-JAX reference (mirrors the PyTorch module)
# ----------------------------------------------------------------------------
def _reference(q, k, v, params):
    def linear(x, w, b):
        return x @ w.T + b
    query = linear(q, params["wq"], params["bq"])
    key = linear(k, params["wk"], params["bk"])
    value = linear(v, params["wv"], params["bv"])
    scale = query.shape[-1] ** 0.5
    temp = jnp.einsum("bqd,bkd->bqk", query, key)
    probs = jax.nn.softmax(temp / scale, axis=-1)
    return jnp.einsum("bqk,bkd->bqd", probs, value)


if __name__ == "__main__":
    # Small shapes consistent with the module's forward: (B, S, dim_in)
    B, S, dim_in, dim_q, dim_k = 2, 8, 32, 32, 32   # dim_q == dim_k required

    key0 = jax.random.PRNGKey(0)
    ks = jax.random.split(key0, 9)
    q = jax.random.normal(ks[0], (B, S, dim_in), dtype=jnp.float32)
    k = jax.random.normal(ks[1], (B, S, dim_in), dtype=jnp.float32)
    v = jax.random.normal(ks[2], (B, S, dim_in), dtype=jnp.float32)

    bound = 1.0 / math.sqrt(dim_in)
    params = {
        "wq": jax.random.uniform(ks[3], (dim_q, dim_in), jnp.float32, -bound, bound),
        "bq": jax.random.uniform(ks[4], (dim_q,), jnp.float32, -bound, bound),
        "wk": jax.random.uniform(ks[5], (dim_k, dim_in), jnp.float32, -bound, bound),
        "bk": jax.random.uniform(ks[6], (dim_k,), jnp.float32, -bound, bound),
        "wv": jax.random.uniform(ks[7], (dim_k, dim_in), jnp.float32, -bound, bound),
        "bv": jax.random.uniform(ks[8], (dim_k,), jnp.float32, -bound, bound),
    }

    out = attention_head(q, k, v, params)
    jax.block_until_ready(out)

    ref = _reference(q, k, v, params)
    assert out.shape == (B, S, dim_k)
    assert jnp.allclose(out, ref, atol=2e-3, rtol=2e-3), "mismatch vs reference"
    print("KERNEL_OK")
</pallas_src>

<mosaic_0001>
module attributes {stable_mosaic.version = 11 : i64} {
  func.func @_projection_kernel(%arg0: i32, %arg1: memref<16x128xf32, #tpu.memory_space<vmem>>, %arg2: memref<16x128xf32, #tpu.memory_space<vmem>>, %arg3: memref<16x128xf32, #tpu.memory_space<vmem>>, %arg4: memref<128x128xf32, #tpu.memory_space<vmem>>, %arg5: memref<1x128xf32, #tpu.memory_space<vmem>>, %arg6: memref<128x128xf32, #tpu.memory_space<vmem>>, %arg7: memref<1x128xf32, #tpu.memory_space<vmem>>, %arg8: memref<128x128xf32, #tpu.memory_space<vmem>>, %arg9: memref<1x128xf32, #tpu.memory_space<vmem>>, %arg10: memref<16x128xf32, #tpu.memory_space<vmem>>, %arg11: memref<16x128xf32, #tpu.memory_space<vmem>>, %arg12: memref<16x128xf32, #tpu.memory_space<vmem>>) attributes {dimension_semantics = [#tpu.dimension_semantics<parallel>], iteration_bounds = array<i64: 1>, scalar_prefetch = 0 : i64, scratch_operands = 0 : i64, tpu.core_type = #tpu.core_type<tc>, window_params = [{transform_indices = @transform_0, window_bounds = array<i64: 16, 128>}, {transform_indices = @transform_1, window_bounds = array<i64: 16, 128>}, {transform_indices = @transform_2, window_bounds = array<i64: 16, 128>}, {pipeline_mode = #tpu.pipeline_mode<synchronous>, transform_indices = @transform_3, window_bounds = array<i64: 128, 128>}, {pipeline_mode = #tpu.pipeline_mode<synchronous>, transform_indices = @transform_4, window_bounds = array<i64: 1, 128>}, {pipeline_mode = #tpu.pipeline_mode<synchronous>, transform_indices = @transform_5, window_bounds = array<i64: 128, 128>}, {pipeline_mode = #tpu.pipeline_mode<synchronous>, transform_indices = @transform_6, window_bounds = array<i64: 1, 128>}, {pipeline_mode = #tpu.pipeline_mode<synchronous>, transform_indices = @transform_7, window_bounds = array<i64: 128, 128>}, {pipeline_mode = #tpu.pipeline_mode<synchronous>, transform_indices = @transform_8, window_bounds = array<i64: 1, 128>}, {transform_indices = @transform_9, window_bounds = array<i64: 16, 128>}, {transform_indices = @transform_10, window_bounds = array<i64: 16, 128>}, {transform_indices = @transform_11, window_bounds = array<i64: 16, 128>}]} {
    %c0 = arith.constant 0 : index
    %c0_0 = arith.constant 0 : index
    %0 = vector.load %arg1[%c0, %c0_0] : memref<16x128xf32, #tpu.memory_space<vmem>>, vector<16x128xf32>
    %c0_1 = arith.constant 0 : index
    %c0_2 = arith.constant 0 : index
    %1 = vector.load %arg4[%c0_1, %c0_2] : memref<128x128xf32, #tpu.memory_space<vmem>>, vector<128x128xf32>
    %cst = arith.constant dense<0.000000e+00> : vector<16x128xf32>
    %2 = tpu.matmul %0, %1, %cst {dimension_numbers = #tpu.dot_dimension_numbers<[1], [0], [0], [1], [0, 0, 1, 1], [], []>} : vector<16x128xf32>, vector<128x128xf32>, vector<16x128xf32> -> vector<16x128xf32>
    %c0_3 = arith.constant 0 : index
    %c0_4 = arith.constant 0 : index
    %3 = vector.load %arg5[%c0_3, %c0_4] : memref<1x128xf32, #tpu.memory_space<vmem>>, vector<1x128xf32>
    %4 = vector.broadcast %3 : vector<1x128xf32> to vector<16x128xf32>
    %5 = arith.addf %2, %4 : vector<16x128xf32>
    %c0_5 = arith.constant 0 : index
    %c0_6 = arith.constant 0 : index
    %6 = vector.load %arg10[%c0_5, %c0_6] : memref<16x128xf32, #tpu.memory_space<vmem>>, vector<16x128xf32>
    tpu.vector_store %arg10[%c0_5, %c0_6], %5 {strides = array<i32>} : memref<16x128xf32, #tpu.memory_space<vmem>>, vector<16x128xf32>,
    %c0_7 = arith.constant 0 : index
    %c0_8 = arith.constant 0 : index
    %7 = vector.load %arg2[%c0_7, %c0_8] : memref<16x128xf32, #tpu.memory_space<vmem>>, vector<16x128xf32>
    %c0_9 = arith.constant 0 : index
    %c0_10 = arith.constant 0 : index
    %8 = vector.load %arg6[%c0_9, %c0_10] : memref<128x128xf32, #tpu.memory_space<vmem>>, vector<128x128xf32>
    %cst_11 = arith.constant dense<0.000000e+00> : vector<16x128xf32>
    %9 = tpu.matmul %7, %8, %cst_11 {dimension_numbers = #tpu.dot_dimension_numbers<[1], [0], [0], [1], [0, 0, 1, 1], [], []>} : vector<16x128xf32>, vector<128x128xf32>, vector<16x128xf32> -> vector<16x128xf32>
    %c0_12 = arith.constant 0 : index
    %c0_13 = arith.constant 0 : index
    %10 = vector.load %arg7[%c0_12, %c0_13] : memref<1x128xf32, #tpu.memory_space<vmem>>, vector<1x128xf32>
    %11 = vector.broadcast %10 : vector<1x128xf32> to vector<16x128xf32>
    %12 = arith.addf %9, %11 : vector<16x128xf32>
    %c0_14 = arith.constant 0 : index
    %c0_15 = arith.constant 0 : index
    %13 = vector.load %arg11[%c0_14, %c0_15] : memref<16x128xf32, #tpu.memory_space<vmem>>, vector<16x128xf32>
    tpu.vector_store %arg11[%c0_14, %c0_15], %12 {strides = array<i32>} : memref<16x128xf32, #tpu.memory_space<vmem>>, vector<16x128xf32>,
    %c0_16 = arith.constant 0 : index
    %c0_17 = arith.constant 0 : index
    %14 = vector.load %arg3[%c0_16, %c0_17] : memref<16x128xf32, #tpu.memory_space<vmem>>, vector<16x128xf32>
    %c0_18 = arith.constant 0 : index
    %c0_19 = arith.constant 0 : index
    %15 = vector.load %arg8[%c0_18, %c0_19] : memref<128x128xf32, #tpu.memory_space<vmem>>, vector<128x128xf32>
    %cst_20 = arith.constant dense<0.000000e+00> : vector<16x128xf32>
    %16 = tpu.matmul %14, %15, %cst_20 {dimension_numbers = #tpu.dot_dimension_numbers<[1], [0], [0], [1], [0, 0, 1, 1], [], []>} : vector<16x128xf32>, vector<128x128xf32>, vector<16x128xf32> -> vector<16x128xf32>
    %c0_21 = arith.constant 0 : index
    %c0_22 = arith.constant 0 : index
    %17 = vector.load %arg9[%c0_21, %c0_22] : memref<1x128xf32, #tpu.memory_space<vmem>>, vector<1x128xf32>
    %18 = vector.broadcast %17 : vector<1x128xf32> to vector<16x128xf32>
    %19 = arith.addf %16, %18 : vector<16x128xf32>
    %c0_23 = arith.constant 0 : index
    %c0_24 = arith.constant 0 : index
    %20 = vector.load %arg12[%c0_23, %c0_24] : memref<16x128xf32, #tpu.memory_space<vmem>>, vector<16x128xf32>
    tpu.vector_store %arg12[%c0_23, %c0_24], %19 {strides = array<i32>} : memref<16x128xf32, #tpu.memory_space<vmem>>, vector<16x128xf32>,
    return
  }
  func.func @transform_0(%arg0: i32) -> (i32, i32) {
    %c0_i32 = arith.constant 0 : i32
    %c0_i32_0 = arith.constant 0 : i32
    return %arg0, %c0_i32 : i32, i32
  }
  func.func @transform_1(%arg0: i32) -> (i32, i32) {
    %c0_i32 = arith.constant 0 : i32
    %c0_i32_0 = arith.constant 0 : i32
    return %arg0, %c0_i32 : i32, i32
  }
  func.func @transform_2(%arg0: i32) -> (i32, i32) {
    %c0_i32 = arith.constant 0 : i32
    %c0_i32_0 = arith.constant 0 : i32
    return %arg0, %c0_i32 : i32, i32
  }
  func.func @transform_3(%arg0: i32) -> (i32, i32) {
    %c0_i32 = arith.constant 0 : i32
    %c0_i32_0 = arith.constant 0 : i32
    %c0_i32_1 = arith.constant 0 : i32
    return %c0_i32, %c0_i32_0 : i32, i32
  }
  func.func @transform_4(%arg0: i32) -> (i32, i32) {
    %c0_i32 = arith.constant 0 : i32
    %c0_i32_0 = arith.constant 0 : i32
    %c0_i32_1 = arith.constant 0 : i32
    return %c0_i32, %c0_i32_0 : i32, i32
  }
  func.func @transform_5(%arg0: i32) -> (i32, i32) {
    %c0_i32 = arith.constant 0 : i32
    %c0_i32_0 = arith.constant 0 : i32
    %c0_i32_1 = arith.constant 0 : i32
    return %c0_i32, %c0_i32_0 : i32, i32
  }
  func.func @transform_6(%arg0: i32) -> (i32, i32) {
    %c0_i32 = arith.constant 0 : i32
    %c0_i32_0 = arith.constant 0 : i32
    %c0_i32_1 = arith.constant 0 : i32
    return %c0_i32, %c0_i32_0 : i32, i32
  }
  func.func @transform_7(%arg0: i32) -> (i32, i32) {
    %c0_i32 = arith.constant 0 : i32
    %c0_i32_0 = arith.constant 0 : i32
    %c0_i32_1 = arith.constant 0 : i32
    return %c0_i32, %c0_i32_0 : i32, i32
  }
  func.func @transform_8(%arg0: i32) -> (i32, i32) {
    %c0_i32 = arith.constant 0 : i32
    %c0_i32_0 = arith.constant 0 : i32
    %c0_i32_1 = arith.constant 0 : i32
    return %c0_i32, %c0_i32_0 : i32, i32
  }
  func.func @transform_9(%arg0: i32) -> (i32, i32) {
    %c0_i32 = arith.constant 0 : i32
    %c0_i32_0 = arith.constant 0 : i32
    return %arg0, %c0_i32 : i32, i32
  }
  func.func @transform_10(%arg0: i32) -> (i32, i32) {
    %c0_i32 = arith.constant 0 : i32
    %c0_i32_0 = arith.constant 0 : i32
    return %arg0, %c0_i32 : i32, i32
  }
  func.func @transform_11(%arg0: i32) -> (i32, i32) {
    %c0_i32 = arith.constant 0 : i32
    %c0_i32_0 = arith.constant 0 : i32
    return %arg0, %c0_i32 : i32, i32
  }
}

</mosaic_0001>

<llo_original>
// kernel: tpu_custom_call.1
$region0: #{tpu_custom_call.1}
  #allocation0 [shape = 'u32[]', space=smem, size = 0x4, offset = 0x4, fixed_abs, tag = 'smem constant byte address 0x4 - core index']
  #allocation1 [shape = 'u32[144,128]{1,0:T(1,128)}', space=vmem, size = 0x12000, scoped, tag = 'internal scratch']
  %s0 = inlined_call_operand.hbm [shape: f32[16,128], index: 0, kind: input, shape index: {}]
  %s1 = inlined_call_operand.hbm [shape: f32[16,128], index: 1, kind: input, shape index: {}]
  %s2 = inlined_call_operand.hbm [shape: f32[16,128], index: 2, kind: input, shape index: {}]
  %s3 = inlined_call_operand.hbm [shape: f32[128,128], index: 3, kind: input, shape index: {}]
  %s4 = inlined_call_operand.vmem [shape: f32[1,128], index: 4, kind: input, shape index: {}]
  %s5 = inlined_call_operand.hbm [shape: f32[128,128], index: 5, kind: input, shape index: {}]
  %s6 = inlined_call_operand.vmem [shape: f32[1,128], index: 6, kind: input, shape index: {}]
  %s7 = inlined_call_operand.hbm [shape: f32[128,128], index: 7, kind: input, shape index: {}]
  %s8 = inlined_call_operand.vmem [shape: f32[1,128], index: 8, kind: input, shape index: {}]
  %s9 = inlined_call_operand.hbm [shape: f32[16,128], index: 9, kind: output, shape index: {0}]
  %s10 = inlined_call_operand.hbm [shape: f32[16,128], index: 10, kind: output, shape index: {1}]
  %s11 = inlined_call_operand.hbm [shape: f32[16,128], index: 11, kind: output, shape index: {2}]
  %12 = xla_tuple %s9, %s10, %s11
  %s13 = sld [smem:[#allocation0]]
  $region86: #{tpu_custom_call.1} parent=0
    _
  %s15 = ssub.s32 1, %s13
  %s16 = scalar_select 0, %s15, %s13
  $region1: #{tpu_custom_call.1} parent=0
    #allocation2 [shape = 'u8[8192]{0}', space=vmem, size = 0x2000, scoped, tag = 'input window, operand 0, single buffered']
    #allocation3 [shape = 's32[1]{0}', space=sflag, size = 0x4, scoped, tag = 'scoped memory for tpu_custom_call.1']
    #allocation4 [shape = 's32[1]{0}', space=sflag, size = 0x4, scoped, tag = 'scoped memory for tpu_custom_call.1']
    #allocation5 [shape = 'u8[8192]{0}', space=vmem, size = 0x2000, scoped, tag = 'input window, operand 1, single buffered']
    #allocation6 [shape = 's32[1]{0}', space=sflag, size = 0x4, scoped, tag = 'scoped memory for tpu_custom_call.1']
    #allocation7 [shape = 'u8[8192]{0}', space=vmem, size = 0x2000, scoped, tag = 'input window, operand 2, single buffered']
    #allocation8 [shape = 'u8[65536]{0}', space=vmem, size = 0x10000, scoped, tag = 'input window, operand 3, single buffered']
    #allocation9 [shape = 's32[1]{0}', space=sflag, size = 0x4, scoped, tag = 'scoped memory for tpu_custom_call.1']
    #allocation10 [shape = 'u8[65536]{0}', space=vmem, size = 0x10000, scoped, tag = 'input window, operand 5, single buffered']
    #allocation11 [shape = 'u8[65536]{0}', space=vmem, size = 0x10000, scoped, tag = 'input window, operand 7, single buffered']
    #allocation12 [shape = 's32[1]{0}', space=sflag, size = 0x4, scoped, tag = 'scoped memory for tpu_custom_call.1']
    #allocation13 [shape = 'u8[8192]{0}', space=vmem, size = 0x2000, scoped, tag = 'output window, operand 0, single buffered']
    #allocation14 [shape = 'u8[8192]{0}', space=vmem, size = 0x2000, scoped, tag = 'output window, operand 1, single buffered']
    #allocation15 [shape = 's32[1]{0}', space=sflag, size = 0x4, scoped, tag = 'scoped memory for tpu_custom_call.1']
    #allocation16 [shape = 'u8[8192]{0}', space=vmem, size = 0x2000, scoped, tag = 'output window, operand 2, single buffered']
    %17 = vsyncpa [#allocation3], 0
    %18 = vsyncpa [#allocation6], 0
    %19 = vsyncpa [#allocation9], 0
    %20 = vsyncpa [#allocation12], 0
    %21 = vsyncpa [#allocation4], 0
    %22 = vsyncpa [#allocation15], 0
    // Predicated region
    $region2: #{tpu_custom_call.1} parent=1 // pred_check
      _
    $region3: #{tpu_custom_call.1} parent=1 // pred_check_branch
      %24 = sbr.rel (0) target = $region5
    $region4: #{tpu_custom_call.1} parent=1 // pred_region
      %s26 = ssub.s32 256, 256
      %27 = vsyncadd [#allocation3], %s26
      %s28 = sshll.u32 [#allocation2], 4
      %s29 = int_to_ptr.vmem [resolvable:$true] %s28
      %34 = dma.hbm_to_vmem [thread:$0]  %s0, 256, %s29, [#allocation3], 128, 128, 8
    $region5: #{tpu_custom_call.1} parent=1 // pred_fallthru
      _
    // Predicated region
    $region6: #{tpu_custom_call.1} parent=1 // pred_check
      _
    $region7: #{tpu_custom_call.1} parent=1 // pred_check_branch
      %36 = sbr.rel (0) target = $region9
    $region8: #{tpu_custom_call.1} parent=1 // pred_region
      %s38 = ssub.s32 256, 256
      %39 = vsyncadd [#allocation6], %s38
      %s40 = sshll.u32 [#allocation5], 4
      %s41 = int_to_ptr.vmem [resolvable:$true] %s40
      %46 = dma.hbm_to_vmem [thread:$0]  %s1, 256, %s41, [#allocation6], 128, 128, 8
    $region9: #{tpu_custom_call.1} parent=1 // pred_fallthru
      _
    // Predicated region
    $region10: #{tpu_custom_call.1} parent=1 // pred_check
      _
    $region11: #{tpu_custom_call.1} parent=1 // pred_check_branch
      %48 = sbr.rel (0) target = $region13
    $region12: #{tpu_custom_call.1} parent=1 // pred_region
      %s50 = ssub.s32 256, 256
      %51 = vsyncadd [#allocation6], %s50
      %s52 = sshll.u32 [#allocation7], 4
      %s53 = int_to_ptr.vmem [resolvable:$true] %s52
      %58 = dma.hbm_to_vmem [thread:$0]  %s2, 256, %s53, [#allocation6], 128, 128, 8
    $region13: #{tpu_custom_call.1} parent=1 // pred_fallthru
      _
    // Predicated region
    $region14: #{tpu_custom_call.1} parent=1 // pred_check
      _
    $region15: #{tpu_custom_call.1} parent=1 // pred_check_branch
      %60 = sbr.rel (0) target = $region17
    $region16: #{tpu_custom_call.1} parent=1 // pred_region
      %s62 = ssub.s32 2048, 2048
      %63 = vsyncadd [#allocation9], %s62
      %s64 = sshll.u32 [#allocation8], 4
      %s65 = int_to_ptr.vmem [resolvable:$true] %s64
      %70 = dma.hbm_to_vmem [thread:$0]  %s3, 2048, %s65, [#allocation9], 128, 128, 8
    $region17: #{tpu_custom_call.1} parent=1 // pred_fallthru
      _
    // Predicated region
    $region18: #{tpu_custom_call.1} parent=1 // pred_check
      _
    $region19: #{tpu_custom_call.1} parent=1 // pred_check_branch
      %72 = sbr.rel (0) target = $region21
    $region20: #{tpu_custom_call.1} parent=1 // pred_region
      _
    $region21: #{tpu_custom_call.1} parent=1 // pred_fallthru
      _
    // Predicated region
    $region22: #{tpu_custom_call.1} parent=1 // pred_check
      _
    $region23: #{tpu_custom_call.1} parent=1 // pred_check_branch
      %74 = sbr.rel (0) target = $region25
    $region24: #{tpu_custom_call.1} parent=1 // pred_region
      %s76 = ssub.s32 2048, 2048
      %77 = vsyncadd [#allocation9], %s76
      %s78 = sshll.u32 [#allocation10], 4
      %s79 = int_to_ptr.vmem [resolvable:$true] %s78
      %84 = dma.hbm_to_vmem [thread:$0]  %s5, 2048, %s79, [#allocation9], 128, 128, 8
    $region25: #{tpu_custom_call.1} parent=1 // pred_fallthru
      _
    // Predicated region
    $region26: #{tpu_custom_call.1} parent=1 // pred_check
      _
    $region27: #{tpu_custom_call.1} parent=1 // pred_check_branch
      %86 = sbr.rel (0) target = $region29
    $region28: #{tpu_custom_call.1} parent=1 // pred_region
      _
    $region29: #{tpu_custom_call.1} parent=1 // pred_fallthru
      _
    // Predicated region
    $region30: #{tpu_custom_call.1} parent=1 // pred_check
      _
    $region31: #{tpu_custom_call.1} parent=1 // pred_check_branch
      %88 = sbr.rel (0) target = $region33
    $region32: #{tpu_custom_call.1} parent=1 // pred_region
      %s90 = ssub.s32 2048, 2048
      %91 = vsyncadd [#allocation12], %s90
      %s92 = sshll.u32 [#allocation11], 4
      %s93 = int_to_ptr.vmem [resolvable:$true] %s92
      %98 = dma.hbm_to_vmem [thread:$0]  %s7, 2048, %s93, [#allocation12], 128, 128, 8
    $region33: #{tpu_custom_call.1} parent=1 // pred_fallthru
      _
    // Predicated region
    $region34: #{tpu_custom_call.1} parent=1 // pred_check
      _
    $region35: #{tpu_custom_call.1} parent=1 // pred_check_branch
      %100 = sbr.rel (0) target = $region37
    $region36: #{tpu_custom_call.1} parent=1 // pred_region
      _
    $region37: #{tpu_custom_call.1} parent=1 // pred_fallthru
      _
    // Predicated region
    $region38: #{tpu_custom_call.1} parent=1 // pred_check
      _
    $region39: #{tpu_custom_call.1} parent=1 // pred_check_branch
      %102 = sbr.rel (0) target = $region41
    $region40: #{tpu_custom_call.1} parent=1 // pred_region
      %103 = dma.done [#allocation3], 256
    $region41: #{tpu_custom_call.1} parent=1 // pred_fallthru
      _
    // Predicated region
    $region42: #{tpu_custom_call.1} parent=1 // pred_check
      _
    $region43: #{tpu_custom_call.1} parent=1 // pred_check_branch
      %105 = sbr.rel (0) target = $region45
    $region44: #{tpu_custom_call.1} parent=1 // pred_region
      %106 = dma.done [#allocation6], 256
    $region45: #{tpu_custom_call.1} parent=1 // pred_fallthru
      _
    // Predicated region
    $region46: #{tpu_custom_call.1} parent=1 // pred_check
      _
    $region47: #{tpu_custom_call.1} parent=1 // pred_check_branch
      %108 = sbr.rel (0) target = $region49
    $region48: #{tpu_custom_call.1} parent=1 // pred_region
      %109 = dma.done [#allocation6], 256
    $region49: #{tpu_custom_call.1} parent=1 // pred_fallthru
      _
    // Predicated region
    $region50: #{tpu_custom_call.1} parent=1 // pred_check
      _
    $region51: #{tpu_custom_call.1} parent=1 // pred_check_branch
      %111 = sbr.rel (0) target = $region53
    $region52: #{tpu_custom_call.1} parent=1 // pred_region
      %112 = dma.done [#allocation9], 2048
    $region53: #{tpu_custom_call.1} parent=1 // pred_fallthru
      _
    // Predicated region
    $region54: #{tpu_custom_call.1} parent=1 // pred_check
      _
    $region55: #{tpu_custom_call.1} parent=1 // pred_check_branch
      %114 = sbr.rel (0) target = $region57
    $region56: #{tpu_custom_call.1} parent=1 // pred_region
      %115 = dma.done [#allocation9], 2048
    $region57: #{tpu_custom_call.1} parent=1 // pred_fallthru
      _
    // Predicated region
    $region58: #{tpu_custom_call.1} parent=1 // pred_check
      _
    $region59: #{tpu_custom_call.1} parent=1 // pred_check_branch
      %117 = sbr.rel (0) target = $region61
    $region60: #{tpu_custom_call.1} parent=1 // pred_region
      %118 = dma.done [#allocation12], 2048
    $region61: #{tpu_custom_call.1} parent=1 // pred_fallthru
      _
    %v119 = vld [vmem:[#allocation2] sm:$0xff]
    %v120 = vld [vmem:[#allocation2 + $0x8] sm:$0xff]
    %v121 = vld [vmem:[#allocation8] sm:$0xff]
    %v122 = vld [vmem:[#allocation8 + $0x8] sm:$0xff]
    %v123 = vld [vmem:[#allocation8 + $0x10] sm:$0xff]
    %v124 = vld [vmem:[#allocation8 + $0x18] sm:$0xff]
    %v125 = vld [vmem:[#allocation8 + $0x20] sm:$0xff]
    %v126 = vld [vmem:[#allocation8 + $0x28] sm:$0xff]
    %v127 = vld [vmem:[#allocation8 + $0x30] sm:$0xff]
    %v128 = vld [vmem:[#allocation8 + $0x38] sm:$0xff]
    %v129 = vld [vmem:[#allocation8 + $0x40] sm:$0xff]
    %v130 = vld [vmem:[#allocation8 + $0x48] sm:$0xff]
    %v131 = vld [vmem:[#allocation8 + $0x50] sm:$0xff]
    %v132 = vld [vmem:[#allocation8 + $0x58] sm:$0xff]
    %v133 = vld [vmem:[#allocation8 + $0x60] sm:$0xff]
    %v134 = vld [vmem:[#allocation8 + $0x68] sm:$0xff]
    %v135 = vld [vmem:[#allocation8 + $0x70] sm:$0xff]
    %v136 = vld [vmem:[#allocation8 + $0x78] sm:$0xff]
    %v137 = vld [vmem:[%s4] sm:$0x1]
    %v139 = vlaneseq
    %v140 = vshrl.u32 %v139, 7
    %v141 = vsub.s32 0, %v140
    %v142 = vrot.slane %v137, %v141
    %144 = vmatprep.subr.mxu0 0.0
    %145 = vmatpush1.msra.mxu0 %v136
    %146 = vmatprep.subr.mxu0 0.0
    %147 = vmatpush1.msra.mxu0 %v135
    %148 = vmatprep.subr.mxu0 0.0
    %149 = vmatpush1.msra.mxu0 %v134
    %150 = vmatprep.subr.mxu0 0.0
    %151 = vmatpush1.msra.mxu0 %v133
    %152 = vmatprep.subr.mxu0 0.0
    %153 = vmatpush1.msra.mxu0 %v132
    %154 = vmatprep.subr.mxu0 0.0
    %155 = vmatpush1.msra.mxu0 %v131
    %156 = vmatprep.subr.mxu0 0.0
    %157 = vmatpush1.msra.mxu0 %v130
    %158 = vmatprep.subr.mxu0 0.0
    %159 = vmatpush1.msra.mxu0 %v129
    %160 = vmatprep.subr.mxu0 0.0
    %161 = vmatpush1.msra.mxu0 %v128
    %162 = vmatprep.subr.mxu0 0.0
    %163 = vmatpush1.msra.mxu0 %v127
    %164 = vmatprep.subr.mxu0 0.0
    %165 = vmatpush1.msra.mxu0 %v126
    %166 = vmatprep.subr.mxu0 0.0
    %167 = vmatpush1.msra.mxu0 %v125
    %168 = vmatprep.subr.mxu0 0.0
    %169 = vmatpush1.msra.mxu0 %v124
    %170 = vmatprep.subr.mxu0 0.0
    %171 = vmatpush1.msra.mxu0 %v123
    %172 = vmatprep.subr.mxu0 0.0
    %173 = vmatpush1.msra.mxu0 %v122
    %174 = vmatprep.subr.mxu0 0.0
    %175 = vmatpush1.msra.mxu0 %v121
    %176 = vmatprep.subr.mxu0 0.0
    %177 = vmatpush2.msra.mxu0 0.0
    %178 = vmatprep.subr.mxu0 0.0
    %179 = vmatpush2.msra.mxu0 0.0
    %180 = vmatprep.subr.mxu0 0.0
    %181 = vmatpush2.msra.mxu0 0.0
    %182 = vmatprep.subr.mxu0 0.0
    %183 = vmatpush2.msra.mxu0 0.0
    %184 = vmatprep.subr.mxu0 0.0
    %185 = vmatpush2.msra.mxu0 0.0
    %186 = vmatprep.subr.mxu0 0.0
    %187 = vmatpush2.msra.mxu0 0.0
    %188 = vmatprep.subr.mxu0 0.0
    %189 = vmatpush2.msra.mxu0 0.0
    %190 = vmatprep.subr.mxu0 0.0
    %191 = vmatpush2.msra.mxu0 0.0
    %192 = vmatprep.subr.mxu0 0.0
    %193 = vmatpush2.msra.mxu0 0.0
    %194 = vmatprep.subr.mxu0 0.0
    %195 = vmatpush2.msra.mxu0 0.0
    %196 = vmatprep.subr.mxu0 0.0
    %197 = vmatpush2.msra.mxu0 0.0
    %198 = vmatprep.subr.mxu0 0.0
    %199 = vmatpush2.msra.mxu0 0.0
    %200 = vmatprep.subr.mxu0 0.0
    %201 = vmatpush2.msra.mxu0 0.0
    %202 = vmatprep.subr.mxu0 0.0
    %203 = vmatpush2.msra.mxu0 0.0
    %204 = vmatprep.subr.mxu0 0.0
    %205 = vmatpush2.msra.mxu0 0.0
    %206 = vmatprep.subr.mxu0 0.0
    %207 = vmatpush2.msra.mxu0 0.0
    %208 = vmatprep.mubr.f32.mxu0 0.0
    %209 = vmatmul.mubr.f32.gmra.mxu0 %v119
    %v210 = vpop.f32.mrf.mxu0
    %v211 = vadd.f32 %v142, %v210
    %v212 = vpop.f32.mrf.mxu0
    %213 = vmatprep.mubr.f32.mxu0 0.0
    %214 = vmatmul.mubr.f32.gmra.mxu0 %v120
    %v215 = vpop.f32.mrf.mxu0
    %v216 = vadd.f32 %v142, %v215
    %v217 = vpop.f32.mrf.mxu0
    %218 = vdwg.mxu0
    %219 = vst [vmem:[#allocation13] sm:$0xff] %v211
    %220 = vst [vmem:[#allocation13 + $0x8] sm:$0xff] %v216
    %v221 = vld [vmem:[#allocation5] sm:$0xff]
    %v222 = vld [vmem:[#allocation5 + $0x8] sm:$0xff]
    %v223 = vld [vmem:[#allocation10] sm:$0xff]
    %v224 = vld [vmem:[#allocation10 + $0x8] sm:$0xff]
    %v225 = vld [vmem:[#allocation10 + $0x10] sm:$0xff]
    %v226 = vld [vmem:[#allocation10 + $0x18] sm:$0xff]
    %v227 = vld [vmem:[#allocation10 + $0x20] sm:$0xff]
    %v228 = vld [vmem:[#allocation10 + $0x28] sm:$0xff]
    %v229 = vld [vmem:[#allocation10 + $0x30] sm:$0xff]
    %v230 = vld [vmem:[#allocation10 + $0x38] sm:$0xff]
    %v231 = vld [vmem:[#allocation10 + $0x40] sm:$0xff]
    %v232 = vld [vmem:[#allocation10 + $0x48] sm:$0xff]
    %v233 = vld [vmem:[#allocation10 + $0x50] sm:$0xff]
    %v234 = vld [vmem:[#allocation10 + $0x58] sm:$0xff]
    %v235 = vld [vmem:[#allocation10 + $0x60] sm:$0xff]
    %v236 = vld [vmem:[#allocation10 + $0x68] sm:$0xff]
    %v237 = vld [vmem:[#allocation10 + $0x70] sm:$0xff]
    %v238 = vld [vmem:[#allocation10 + $0x78] sm:$0xff]
    %v239 = vld [vmem:[%s6] sm:$0x1]
    %v241 = vlaneseq
    %v242 = vshrl.u32 %v241, 7
    %v243 = vsub.s32 0, %v242
    %v244 = vrot.slane %v239, %v243
    %246 = vmatprep.subr.mxu0 0.0
    %247 = vmatpush1.msra.mxu0 %v238
    %248 = vmatprep.subr.mxu0 0.0
    %249 = vmatpush1.msra.mxu0 %v237
    %250 = vmatprep.subr.mxu0 0.0
    %251 = vmatpush1.msra.mxu0 %v236
    %252 = vmatprep.subr.mxu0 0.0
    %253 = vmatpush1.msra.mxu0 %v235
    %254 = vmatprep.subr.mxu0 0.0
    %255 = vmatpush1.msra.mxu0 %v234
    %256 = vmatprep.subr.mxu0 0.0
    %257 = vmatpush1.msra.mxu0 %v233
    %258 = vmatprep.subr.mxu0 0.0
    %259 = vmatpush1.msra.mxu0 %v232
    %260 = vmatprep.subr.mxu0 0.0
    %261 = vmatpush1.msra.mxu0 %v231
    %262 = vmatprep.subr.mxu0 0.0
    %263 = vmatpush1.msra.mxu0 %v230
    %264 = vmatprep.subr.mxu0 0.0
    %265 = vmatpush1.msra.mxu0 %v229
    %266 = vmatprep.subr.mxu0 0.0
    %267 = vmatpush1.msra.mxu0 %v228
    %268 = vmatprep.subr.mxu0 0.0
    %269 = vmatpush1.msra.mxu0 %v227
    %270 = vmatprep.subr.mxu0 0.0
    %271 = vmatpush1.msra.mxu0 %v226
    %272 = vmatprep.subr.mxu0 0.0
    %273 = vmatpush1.msra.mxu0 %v225
    %274 = vmatprep.subr.mxu0 0.0
    %275 = vmatpush1.msra.mxu0 %v224
    %276 = vmatprep.subr.mxu0 0.0
    %277 = vmatpush1.msra.mxu0 %v223
    %278 = vmatprep.subr.mxu0 0.0
    %279 = vmatpush2.msra.mxu0 0.0
    %280 = vmatprep.subr.mxu0 0.0
    %281 = vmatpush2.msra.mxu0 0.0
    %282 = vmatprep.subr.mxu0 0.0
    %283 = vmatpush2.msra.mxu0 0.0
    %284 = vmatprep.subr.mxu0 0.0
    %285 = vmatpush2.msra.mxu0 0.0
    %286 = vmatprep.subr.mxu0 0.0
    %287 = vmatpush2.msra.mxu0 0.0
    %288 = vmatprep.subr.mxu0 0.0
    %289 = vmatpush2.msra.mxu0 0.0
    %290 = vmatprep.subr.mxu0 0.0
    %291 = vmatpush2.msra.mxu0 0.0
    %292 = vmatprep.subr.mxu0 0.0
    %293 = vmatpush2.msra.mxu0 0.0
    %294 = vmatprep.subr.mxu0 0.0
    %295 = vmatpush2.msra.mxu0 0.0
    %296 = vmatprep.subr.mxu0 0.0
    %297 = vmatpush2.msra.mxu0 0.0
    %298 = vmatprep.subr.mxu0 0.0
    %299 = vmatpush2.msra.mxu0 0.0
    %300 = vmatprep.subr.mxu0 0.0
    %301 = vmatpush2.msra.mxu0 0.0
    %302 = vmatprep.subr.mxu0 0.0
    %303 = vmatpush2.msra.mxu0 0.0
    %304 = vmatprep.subr.mxu0 0.0
    %305 = vmatpush2.msra.mxu0 0.0
    %306 = vmatprep.subr.mxu0 0.0
    %307 = vmatpush2.msra.mxu0 0.0
    %308 = vmatprep.subr.mxu0 0.0
    %309 = vmatpush2.msra.mxu0 0.0
    %310 = vmatprep.mubr.f32.mxu0 0.0
    %311 = vmatmul.mubr.f32.gmra.mxu0 %v221
    %v312 = vpop.f32.mrf.mxu0
    %v313 = vadd.f32 %v244, %v312
    %v314 = vpop.f32.mrf.mxu0
    %315 = vmatprep.mubr.f32.mxu0 0.0
    %316 = vmatmul.mubr.f32.gmra.mxu0 %v222
    %v317 = vpop.f32.mrf.mxu0
    %v318 = vadd.f32 %v244, %v317
    %v319 = vpop.f32.mrf.mxu0
    %320 = vdwg.mxu0
    %321 = vst [vmem:[#allocation14] sm:$0xff] %v313
    %322 = vst [vmem:[#allocation14 + $0x8] sm:$0xff] %v318
    %v323 = vld [vmem:[#allocation7] sm:$0xff]
    %v324 = vld [vmem:[#allocation7 + $0x8] sm:$0xff]
    %v325 = vld [vmem:[#allocation11] sm:$0xff]
    %v326 = vld [vmem:[#allocation11 + $0x8] sm:$0xff]
    %v327 = vld [vmem:[#allocation11 + $0x10] sm:$0xff]
    %v328 = vld [vmem:[#allocation11 + $0x18] sm:$0xff]
    %v329 = vld [vmem:[#allocation11 + $0x20] sm:$0xff]
    %v330 = vld [vmem:[#allocation11 + $0x28] sm:$0xff]
    %v331 = vld [vmem:[#allocation11 + $0x30] sm:$0xff]
    %v332 = vld [vmem:[#allocation11 + $0x38] sm:$0xff]
    %v333 = vld [vmem:[#allocation11 + $0x40] sm:$0xff]
    %v334 = vld [vmem:[#allocation11 + $0x48] sm:$0xff]
    %v335 = vld [vmem:[#allocation11 + $0x50] sm:$0xff]
    %v336 = vld [vmem:[#allocation11 + $0x58] sm:$0xff]
    %v337 = vld [vmem:[#allocation11 + $0x60] sm:$0xff]
    %v338 = vld [vmem:[#allocation11 + $0x68] sm:$0xff]
    %v339 = vld [vmem:[#allocation11 + $0x70] sm:$0xff]
    %v340 = vld [vmem:[#allocation11 + $0x78] sm:$0xff]
    %v341 = vld [vmem:[%s8] sm:$0x1]
    %v343 = vlaneseq
    %v344 = vshrl.u32 %v343, 7
    %v345 = vsub.s32 0, %v344
    %v346 = vrot.slane %v341, %v345
    %348 = vmatprep.subr.mxu0 0.0
    %349 = vmatpush1.msra.mxu0 %v340
    %350 = vmatprep.subr.mxu0 0.0
    %351 = vmatpush1.msra.mxu0 %v339
    %352 = vmatprep.subr.mxu0 0.0
    %353 = vmatpush1.msra.mxu0 %v338
    %354 = vmatprep.subr.mxu0 0.0
    %355 = vmatpush1.msra.mxu0 %v337
    %356 = vmatprep.subr.mxu0 0.0
    %357 = vmatpush1.msra.mxu0 %v336
    %358 = vmatprep.subr.mxu0 0.0
    %359 = vmatpush1.msra.mxu0 %v335
    %360 = vmatprep.subr.mxu0 0.0
    %361 = vmatpush1.msra.mxu0 %v334
    %362 = vmatprep.subr.mxu0 0.0
    %363 = vmatpush1.msra.mxu0 %v333
    %364 = vmatprep.subr.mxu0 0.0
    %365 = vmatpush1.msra.mxu0 %v332
    %366 = vmatprep.subr.mxu0 0.0
    %367 = vmatpush1.msra.mxu0 %v331
    %368 = vmatprep.subr.mxu0 0.0
    %369 = vmatpush1.msra.mxu0 %v330
    %370 = vmatprep.subr.mxu0 0.0
    %371 = vmatpush1.msra.mxu0 %v329
    %372 = vmatprep.subr.mxu0 0.0
    %373 = vmatpush1.msra.mxu0 %v328
    %374 = vmatprep.subr.mxu0 0.0
    %375 = vmatpush1.msra.mxu0 %v327
    %376 = vmatprep.subr.mxu0 0.0
    %377 = vmatpush1.msra.mxu0 %v326
    %378 = vmatprep.subr.mxu0 0.0
    %379 = vmatpush1.msra.mxu0 %v325
    %380 = vmatprep.subr.mxu0 0.0
    %381 = vmatpush2.msra.mxu0 0.0
    %382 = vmatprep.subr.mxu0 0.0
    %383 = vmatpush2.msra.mxu0 0.0
    %384 = vmatprep.subr.mxu0 0.0
    %385 = vmatpush2.msra.mxu0 0.0
    %386 = vmatprep.subr.mxu0 0.0
    %387 = vmatpush2.msra.mxu0 0.0
    %388 = vmatprep.subr.mxu0 0.0
    %389 = vmatpush2.msra.mxu0 0.0
    %390 = vmatprep.subr.mxu0 0.0
    %391 = vmatpush2.msra.mxu0 0.0
    %392 = vmatprep.subr.mxu0 0.0
    %393 = vmatpush2.msra.mxu0 0.0
    %394 = vmatprep.subr.mxu0 0.0
    %395 = vmatpush2.msra.mxu0 0.0
    %396 = vmatprep.subr.mxu0 0.0
    %397 = vmatpush2.msra.mxu0 0.0
    %398 = vmatprep.subr.mxu0 0.0
    %399 = vmatpush2.msra.mxu0 0.0
    %400 = vmatprep.subr.mxu0 0.0
    %401 = vmatpush2.msra.mxu0 0.0
    %402 = vmatprep.subr.mxu0 0.0
    %403 = vmatpush2.msra.mxu0 0.0
    %404 = vmatprep.subr.mxu0 0.0
    %405 = vmatpush2.msra.mxu0 0.0
    %406 = vmatprep.subr.mxu0 0.0
    %407 = vmatpush2.msra.mxu0 0.0
    %408 = vmatprep.subr.mxu0 0.0
    %409 = vmatpush2.msra.mxu0 0.0
    %410 = vmatprep.subr.mxu0 0.0
    %411 = vmatpush2.msra.mxu0 0.0
    %412 = vmatprep.mubr.f32.mxu0 0.0
    %413 = vmatmul.mubr.f32.gmra.mxu0 %v323
    %v414 = vpop.f32.mrf.mxu0
    %v415 = vadd.f32 %v346, %v414
    %v416 = vpop.f32.mrf.mxu0
    %417 = vmatprep.mubr.f32.mxu0 0.0
    %418 = vmatmul.mubr.f32.gmra.mxu0 %v324
    %v419 = vpop.f32.mrf.mxu0
    %v420 = vadd.f32 %v346, %v419
    %v421 = vpop.f32.mrf.mxu0
    %422 = vdwg.mxu0
    %423 = vst [vmem:[#allocation16] sm:$0xff] %v415
    %424 = vst [vmem:[#allocation16 + $0x8] sm:$0xff] %v420
    // Predicated region
    $region62: #{tpu_custom_call.1} parent=1 // pred_check
      _
    $region63: #{tpu_custom_call.1} parent=1 // pred_check_branch
      %426 = sbr.rel (0) target = $region65
    $region64: #{tpu_custom_call.1} parent=1 // pred_region
      %s428 = ssub.s32 256, 256
      %429 = vsyncadd [#allocation4], %s428
      %s430 = sshll.u32 [#allocation13], 4
      %s431 = int_to_ptr.vmem [resolvable:$true] %s430
      %436 = dma.vmem_to_hbm [thread:$0]  %s431, 256, %s9, [#allocation4], 128, 128, 8
    $region65: #{tpu_custom_call.1} parent=1 // pred_fallthru
      _
    // Predicated region
    $region66: #{tpu_custom_call.1} parent=1 // pred_check
      _
    $region67: #{tpu_custom_call.1} parent=1 // pred_check_branch
      %438 = sbr.rel (0) target = $region69
    $region68: #{tpu_custom_call.1} parent=1 // pred_region
      %s440 = ssub.s32 256, 256
      %441 = vsyncadd [#allocation15], %s440
      %s442 = sshll.u32 [#allocation14], 4
      %s443 = int_to_ptr.vmem [resolvable:$true] %s442
      %448 = dma.vmem_to_hbm [thread:$0]  %s443, 256, %s10, [#allocation15], 128, 128, 8
    $region69: #{tpu_custom_call.1} parent=1 // pred_fallthru
      _
    // Predicated region
    $region70: #{tpu_custom_call.1} parent=1 // pred_check
      _
    $region71: #{tpu_custom_call.1} parent=1 // pred_check_branch
      %450 = sbr.rel (0) target = $region73
    $region72: #{tpu_custom_call.1} parent=1 // pred_region
      %s452 = ssub.s32 256, 256
      %453 = vsyncadd [#allocation15], %s452
      %s454 = sshll.u32 [#allocation16], 4
      %s455 = int_to_ptr.vmem [resolvable:$true] %s454
      %460 = dma.vmem_to_hbm [thread:$0]  %s455, 256, %s11, [#allocation15], 128, 128, 8
    $region73: #{tpu_custom_call.1} parent=1 // pred_fallthru
      _
    // Predicated region
    $region74: #{tpu_custom_call.1} parent=1 // pred_check
      _
    $region75: #{tpu_custom_call.1} parent=1 // pred_check_branch
      %462 = sbr.rel (0) target = $region77
    $region76: #{tpu_custom_call.1} parent=1 // pred_region
      %463 = dma.done [#allocation4], 256
    $region77: #{tpu_custom_call.1} parent=1 // pred_fallthru
      _
    // Predicated region
    $region78: #{tpu_custom_call.1} parent=1 // pred_check
      _
    $region79: #{tpu_custom_call.1} parent=1 // pred_check_branch
      %465 = sbr.rel (0) target = $region81
    $region80: #{tpu_custom_call.1} parent=1 // pred_region
      %466 = dma.done [#allocation15], 256
    $region81: #{tpu_custom_call.1} parent=1 // pred_fallthru
      _
    // Predicated region
    $region82: #{tpu_custom_call.1} parent=1 // pred_check
      _
    $region83: #{tpu_custom_call.1} parent=1 // pred_check_branch
      %468 = sbr.rel (0) target = $region85
    $region84: #{tpu_custom_call.1} parent=1 // pred_region
      %469 = dma.done [#allocation15], 256
    $region85: #{tpu_custom_call.1} parent=1 // pred_fallthru
      _
    %470 = vsyncpa [#allocation3], 1
    %471 = vsyncpa [#allocation6], 1
    %472 = vsyncpa [#allocation9], 1
    %473 = vsyncpa [#allocation12], 1
    %474 = vsyncpa [#allocation4], 1
    %475 = vsyncpa [#allocation15], 1

</llo_original>
